<compile_context>
chip_gen: v7x
topology: tpu7x:2x2x1
jax: 0.10.0
libtpu: 0.0.40
codegen_flags: <defaults>
</compile_context>

<pallas_src>
from typing import NamedTuple

import numpy as np
import jax
import jax.numpy as jnp
from jax.experimental import pallas as pl
from jax.experimental.pallas import tpu as pltpu

_LANE = 128
_SUBLANE = 8


def _round_up(x, m):
    return ((x + m - 1) // m) * m


def _cdiv(a, b):
    return -(-a // b)


def _is_concrete(x):
    """True iff x is a concrete (non-traced) array we can safely cache."""
    if isinstance(x, np.ndarray):
        return True
    if isinstance(x, jax.Array):
        try:
            return not isinstance(x, jax.core.Tracer)
        except Exception:      # Tracer not reachable at this path: don't cache.
            return False
    return False


# ---------------------------------------------------------------------------
# kernel
# ---------------------------------------------------------------------------
def _chi2_kernel(d_row_ref, d_col_ref, cov_ref, out_ref):
    # d_row_ref: (TK, 1)       f32 residual slice for this cov row block
    # d_col_ref: (1, N_cols)   f32 full residual (resident, constant block)
    # cov_ref:   (TK, N_cols)  row block of the inverse covariance (f32 or bf16)
    # out_ref:   (1, 1, 1)     f32 partial chi^2 accumulator for this split
    k = pl.program_id(1)

    @pl.when(k == 0)
    def _init():
        out_ref[...] = jnp.zeros_like(out_ref)

    # VPU broadcast-FMA (no MXU): scale each cov row by its residual in f32,
    # reduce over the sublane (row) axis, dot with the resident residual row.
    scaled = cov_ref[...].astype(jnp.float32) * d_row_ref[...]          # (TK, N)
    col_part = jnp.sum(scaled, axis=0, keepdims=True)                   # (1, N)
    out_ref[...] += jnp.sum(col_part * d_col_ref[...]).reshape(1, 1, 1)


# ---------------------------------------------------------------------------
# covariance preparation (cast + pad, done once and cached by CustomLoss)
# ---------------------------------------------------------------------------
class _PreparedCov(NamedTuple):
    cov_p: jax.Array          # (n_rows, n_cols) padded / cast covariance
    n: int
    n_cols: int
    n_rows: int
    tk: int
    splits: int
    bps: int                  # row blocks per split
    vmem_limit_bytes: int


def prepare_cov(cov_matrix, n, *, tk=None, num_splits=1, cov_dtype=None,
                vmem_budget_bytes=24 * 1024 * 1024):
    """Cast + pad the covariance once (hoists the O(N^2) wrapper work)."""
    cov = jnp.asarray(cov_matrix)
    target = jnp.dtype(cov_dtype) if cov_dtype is not None else jnp.dtype(jnp.float32)
    if cov.dtype != target:
        cov = cov.astype(target)
    assert cov.shape == (n, n), (cov.shape, n)

    itemsize = target.itemsize
    n_cols = _round_up(n, _LANE)

    # Per-row VMEM estimate: double-buffered cov stream plus (conservatively)
    # two full-width f32 temporaries for the in-kernel cast / broadcast-FMA.
    bytes_per_row = n_cols * (2 * itemsize + 8)
    if tk is None:
        max_rows = max(vmem_budget_bytes // bytes_per_row, _SUBLANE)
        if max_rows >= _LANE:
            tk = (max_rows // _LANE) * _LANE       # prefer 128-aligned row blocks
        else:
            tk = (max_rows // _SUBLANE) * _SUBLANE  # budget enforced down to 8 rows
    else:
        tk = _round_up(tk, _SUBLANE)
    tk = max(min(tk, n_cols), _SUBLANE)

    n_blocks = _cdiv(n, tk)
    splits = num_splits if (num_splits > 1 and n_blocks >= num_splits) else 1

    # rows padded to the tiling granularity, columns only to the lane multiple
    n_rows = _round_up(n, tk * splits)
    bps = n_rows // (tk * splits)
    cov_p = jnp.pad(cov, ((0, n_rows - n), (0, n_cols - n)))

    vmem_limit = max(tk * bytes_per_row + 8 * n_cols * 4 + (4 << 20), 32 << 20)
    return _PreparedCov(cov_p, n, n_cols, n_rows, tk, splits, bps, int(vmem_limit))


def _chi2_from_prepared(pred, data, prep):
    pred = jnp.asarray(pred, jnp.float32).reshape(-1)
    data = jnp.asarray(data, jnp.float32).reshape(-1)
    assert pred.shape[0] == prep.n and data.shape[0] == prep.n

    n, n_cols, n_rows = prep.n, prep.n_cols, prep.n_rows
    tk, splits, bps = prep.tk, prep.splits, prep.bps

    # residual computed once (O(N)); kept in f32 in every path
    d = pred - data
    d_col = jnp.pad(d, (0, n_cols - n)).reshape(1, n_cols)
    d_row = jnp.pad(d, (0, n_rows - n)).reshape(n_rows, 1)

    # TODO(synk): on v7x use pltpu.CORE_PARALLEL for the split axis (verify
    # per-TC HBM bandwidth scaling with a trace) before defaulting num_splits=2.
    first_sem = "parallel" if splits > 1 else "arbitrary"

    partials = pl.pallas_call(
        _chi2_kernel,
        out_shape=jax.ShapeDtypeStruct((splits, 1, 1), jnp.float32),
        grid=(splits, bps),
        in_specs=[
            pl.BlockSpec((tk, 1), lambda c, k: (c * bps + k, 0)),       # d rows
            pl.BlockSpec((1, n_cols), lambda c, k: (0, 0)),             # d full
            pl.BlockSpec((tk, n_cols), lambda c, k: (c * bps + k, 0)),  # cov rows
        ],
        out_specs=pl.BlockSpec((1, 1, 1), lambda c, k: (c, 0, 0)),
        compiler_params=pltpu.CompilerParams(
            dimension_semantics=(first_sem, "arbitrary"),
            vmem_limit_bytes=prep.vmem_limit_bytes),
    )(d_row, d_col, prep.cov_p)

    return jnp.sum(partials)


def raw_loss_fct(pred, data, cov_matrix, *, tk=None, num_splits=1,
                 cov_dtype=None, vmem_budget_bytes=24 * 1024 * 1024):
    """chi^2 = (pred - data) @ cov_matrix @ (pred - data).

    Standalone convenience path: prepares (casts + pads) cov on every call.
    For repeated evaluations with a fixed covariance use CustomLoss, which
    caches the prepared covariance and removes the per-call N^2 HBM passes.
    """
    pred = jnp.asarray(pred, jnp.float32).reshape(-1)
    prep = prepare_cov(cov_matrix, pred.shape[0], tk=tk, num_splits=num_splits,
                       cov_dtype=cov_dtype, vmem_budget_bytes=vmem_budget_bytes)
    return _chi2_from_prepared(pred, data, prep)


class CustomLoss:
    """JAX/Pallas equivalent of the PyTorch CustomLoss module.

    Caches the cast + padded covariance across calls (keyed on the concrete
    input array), so only the O(N) residual work happens per call besides the
    row-streamed kernel itself.
    """

    def __init__(self, extended_loss, *, cov_dtype=None, tk=None, num_splits=1,
                 vmem_budget_bytes=24 * 1024 * 1024):
        self.extended_loss = extended_loss
        self.cov_dtype = cov_dtype            # e.g. jnp.bfloat16: halves cov HBM read
        self.tk = tk
        self.num_splits = num_splits
        self.vmem_budget_bytes = vmem_budget_bytes
        self._cached_src = None
        self._cached_prep = None

    def _prepared(self, cov_matrix, n):
        if (self._cached_prep is not None and self._cached_src is cov_matrix
                and self._cached_prep.n == n):
            return self._cached_prep
        prep = prepare_cov(cov_matrix, n, tk=self.tk, num_splits=self.num_splits,
                           cov_dtype=self.cov_dtype,
                           vmem_budget_bytes=self.vmem_budget_bytes)
        if _is_concrete(cov_matrix):          # never cache tracers (jit-safe)
            self._cached_src = cov_matrix
            self._cached_prep = prep
        return prep

    def __call__(self, pred, data, cov_matrix, small_x_point1=None,
                 small_x_point2=None, model=None):
        if self.extended_loss:
            # TODO(synk): complete_loss_fct evaluates the (opaque) NN model at
            # the small-x points to add regularisation terms; only the raw
            # chi^2 branch is implemented here.
            raise NotImplementedError(
                "extended_loss branch requires the model definition")
        pred = jnp.asarray(pred, jnp.float32).reshape(-1)
        data = jnp.asarray(data, jnp.float32).reshape(-1)
        prep = self._prepared(cov_matrix, pred.shape[0])
        return _chi2_from_prepared(pred, data, prep)


if __name__ == "__main__":
    key = jax.random.PRNGKey(0)
    k1, k2, k3 = jax.random.split(key, 3)

    N = 300  # deliberately not a multiple of 128 to exercise the padding path
    pred = jax.random.normal(k1, (N,), dtype=jnp.float32)
    data = jax.random.normal(k2, (N,), dtype=jnp.float32)
    # deterministic symmetric positive-definite "inverse covariance"
    a = jax.random.normal(k3, (N, N), dtype=jnp.float32) / jnp.sqrt(N)
    cov_inv = a @ a.T + jnp.eye(N, dtype=jnp.float32)

    # pure-JAX reference
    d = pred - data
    ref = d @ cov_inv @ d

    loss_mod = CustomLoss(extended_loss=False)

    # 1) default path (single grid step at this size), first call prepares + caches cov
    loss = loss_mod(pred, data, cov_inv)
    jax.block_until_ready(loss)
    assert jnp.allclose(loss, ref, rtol=1e-4, atol=1e-3), (loss, ref)

    # 2) cached covariance path (second call reuses the prepared cov)
    loss_cached = loss_mod(pred, data, cov_inv)
    jax.block_until_ready(loss_cached)
    assert jnp.allclose(loss_cached, ref, rtol=1e-4, atol=1e-3), (loss_cached, ref)

    # 3) forced small row tile -> multi-step pipelined grid
    loss_tiled = raw_loss_fct(pred, data, cov_inv, tk=128)
    jax.block_until_ready(loss_tiled)
    assert jnp.allclose(loss_tiled, ref, rtol=1e-4, atol=1e-3), (loss_tiled, ref)

    # 4) split path (leading "parallel" axis; serial on 1-TC chips, correct everywhere)
    loss_split = raw_loss_fct(pred, data, cov_inv, tk=128, num_splits=2)
    jax.block_until_ready(loss_split)
    assert jnp.allclose(loss_split, ref, rtol=1e-4, atol=1e-3), (loss_split, ref)

    # 5) bf16 cov streaming (opt-in perf mode; residual stays f32) -> looser tolerance
    loss_bf16 = raw_loss_fct(pred, data, cov_inv, cov_dtype=jnp.bfloat16)
    jax.block_until_ready(loss_bf16)
    assert jnp.allclose(loss_bf16, ref, rtol=2e-2, atol=1e-1), (loss_bf16, ref)

    print("KERNEL_OK")
</pallas_src>

<mosaic_0001>
module attributes {stable_mosaic.version = 11 : i64} {
  func.func @_chi2_kernel(%arg0: i32, %arg1: i32, %arg2: memref<384x1xf32, #tpu.memory_space<vmem>>, %arg3: memref<1x384xf32, #tpu.memory_space<vmem>>, %arg4: memref<384x384xf32, #tpu.memory_space<vmem>>, %arg5: memref<1x1x1xf32, #tpu.memory_space<vmem>>) attributes {dimension_semantics = [#tpu.dimension_semantics<arbitrary>, #tpu.dimension_semantics<arbitrary>], iteration_bounds = array<i64: 1, 1>, scalar_prefetch = 0 : i64, scratch_operands = 0 : i64, tpu.core_type = #tpu.core_type<tc>, window_params = [{transform_indices = @transform_0, window_bounds = array<i64: 384, 1>}, {pipeline_mode = #tpu.pipeline_mode<synchronous>, transform_indices = @transform_1, window_bounds = array<i64: 1, 384>}, {transform_indices = @transform_2, window_bounds = array<i64: 384, 384>}, {transform_indices = @transform_3, window_bounds = array<i64: 1, 1, 1>}]} {
    %c0_i32 = arith.constant 0 : i32
    %0 = arith.cmpi eq, %arg1, %c0_i32 : i32
    %1 = arith.extui %0 : i1 to i32
    %c0_i32_0 = arith.constant 0 : i32
    %2 = arith.cmpi ne, %1, %c0_i32_0 : i32
    scf.if %2 {
      %cst_13 = arith.constant 0.000000e+00 : f32
      %19 = vector.broadcast %cst_13 : f32 to vector<1x1x1xf32>
      %c0_14 = arith.constant 0 : index
      %c0_15 = arith.constant 0 : index
      %c0_16 = arith.constant 0 : index
      %20 = vector.load %arg5[%c0_14, %c0_15, %c0_16] : memref<1x1x1xf32, #tpu.memory_space<vmem>>, vector<1x1x1xf32>
      tpu.vector_store %arg5[%c0_14, %c0_15, %c0_16], %19 {strides = array<i32>} : memref<1x1x1xf32, #tpu.memory_space<vmem>>, vector<1x1x1xf32>,
    } else {
    }
    %c0 = arith.constant 0 : index
    %c0_1 = arith.constant 0 : index
    %3 = vector.load %arg4[%c0, %c0_1] : memref<384x384xf32, #tpu.memory_space<vmem>>, vector<384x384xf32>
    %c0_2 = arith.constant 0 : index
    %c0_3 = arith.constant 0 : index
    %4 = vector.load %arg2[%c0_2, %c0_3] : memref<384x1xf32, #tpu.memory_space<vmem>>, vector<384x1xf32>
    %5 = vector.broadcast %4 : vector<384x1xf32> to vector<384x384xf32>
    %6 = arith.mulf %3, %5 : vector<384x384xf32>
    %cst = arith.constant dense<0.000000e+00> : vector<384xf32>
    %7 = vector.multi_reduction <add>, %6, %cst [0] : vector<384x384xf32> to vector<384xf32>
    %8 = vector.shape_cast %7 : vector<384xf32> to vector<1x384xf32>
    %c0_4 = arith.constant 0 : index
    %c0_5 = arith.constant 0 : index
    %c0_6 = arith.constant 0 : index
    %9 = vector.load %arg5[%c0_4, %c0_5, %c0_6] : memref<1x1x1xf32, #tpu.memory_space<vmem>>, vector<1x1x1xf32>
    %c0_7 = arith.constant 0 : index
    %c0_8 = arith.constant 0 : index
    %10 = vector.load %arg3[%c0_7, %c0_8] : memref<1x384xf32, #tpu.memory_space<vmem>>, vector<1x384xf32>
    %11 = arith.mulf %8, %10 : vector<1x384xf32>
    %12 = vector.shape_cast %11 : vector<1x384xf32> to vector<1x1x384xf32>
    %cst_9 = arith.constant dense<0.000000e+00> : vector<1xf32>
    %13 = vector.multi_reduction <add>, %12, %cst_9 [1, 2] : vector<1x1x384xf32> to vector<1xf32>
    %14 = vector.shape_cast %13 : vector<1xf32> to vector<1x1x1xf32>
    %15 = vector.extract %14[0, 0, 0] : f32 from vector<1x1x1xf32>
    %16 = vector.broadcast %15 : f32 to vector<1x1x1xf32>
    %17 = arith.addf %9, %16 : vector<1x1x1xf32>
    %c0_10 = arith.constant 0 : index
    %c0_11 = arith.constant 0 : index
    %c0_12 = arith.constant 0 : index
    %18 = vector.load %arg5[%c0_10, %c0_11, %c0_12] : memref<1x1x1xf32, #tpu.memory_space<vmem>>, vector<1x1x1xf32>
    tpu.vector_store %arg5[%c0_10, %c0_11, %c0_12], %17 {strides = array<i32>} : memref<1x1x1xf32, #tpu.memory_space<vmem>>, vector<1x1x1xf32>,
    return
  }
  func.func @transform_0(%arg0: i32, %arg1: i32) -> (i32, i32) {
    %c1_i32 = arith.constant 1 : i32
    %0 = arith.muli %arg0, %c1_i32 : i32
    %1 = arith.addi %0, %arg1 : i32
    %c0_i32 = arith.constant 0 : i32
    %c0_i32_0 = arith.constant 0 : i32
    return %1, %c0_i32 : i32, i32
  }
  func.func @transform_1(%arg0: i32, %arg1: i32) -> (i32, i32) {
    %c0_i32 = arith.constant 0 : i32
    %c0_i32_0 = arith.constant 0 : i32
    %c0_i32_1 = arith.constant 0 : i32
    return %c0_i32, %c0_i32_0 : i32, i32
  }
  func.func @transform_2(%arg0: i32, %arg1: i32) -> (i32, i32) {
    %c1_i32 = arith.constant 1 : i32
    %0 = arith.muli %arg0, %c1_i32 : i32
    %1 = arith.addi %0, %arg1 : i32
    %c0_i32 = arith.constant 0 : i32
    %c0_i32_0 = arith.constant 0 : i32
    return %1, %c0_i32 : i32, i32
  }
  func.func @transform_3(%arg0: i32, %arg1: i32) -> (i32, i32, i32) {
    %c0_i32 = arith.constant 0 : i32
    %c0_i32_0 = arith.constant 0 : i32
    %c0_i32_1 = arith.constant 0 : i32
    return %arg0, %c0_i32, %c0_i32_0 : i32, i32, i32
  }
}

</mosaic_0001>

<llo_original>
// kernel: tpu_custom_call.1
$region0: #{tpu_custom_call.1}
  #allocation0 [shape = 'u32[]', space=smem, size = 0x4, offset = 0x4, fixed_abs, tag = 'smem constant byte address 0x4 - core index']
  #allocation1 [shape = 'u32[144,128]{1,0:T(1,128)}', space=vmem, size = 0x12000, scoped, tag = 'internal scratch']
  %s0 = inlined_call_operand.vmem [shape: f32[384,1], index: 0, kind: input, shape index: {}]
  %s1 = inlined_call_operand.vmem [shape: f32[1,384], index: 1, kind: input, shape index: {}]
  %s2 = inlined_call_operand.hbm [shape: f32[384,384], index: 2, kind: input, shape index: {}]
  %s3 = inlined_call_operand.hbm [shape: f32[1,1,1], index: 3, kind: output, shape index: {}]
  %s4 = sld [smem:[#allocation0]]
  $region30: #{tpu_custom_call.1} parent=0
    _
  %s6 = ssub.s32 1, %s4
  %s7 = scalar_select 0, %s6, %s4
  $region1: #{tpu_custom_call.1} parent=0
    #allocation2 [shape = 'u8[589824]{0}', space=vmem, size = 0x90000, scoped, tag = 'input window, operand 2, single buffered']
    #allocation3 [shape = 's32[1]{0}', space=sflag, size = 0x4, scoped, tag = 'scoped memory for tpu_custom_call.1']
    #allocation4 [shape = 's32[1]{0}', space=sflag, size = 0x4, scoped, tag = 'scoped memory for tpu_custom_call.1']
    #allocation5 [shape = 'u8[512]{0}', space=vmem, size = 0x400, scoped, tag = 'output window, operand 0, single buffered']
    %8 = vsyncpa [#allocation3], 0
    %9 = vsyncpa [#allocation4], 0
    // Predicated region
    $region2: #{tpu_custom_call.1} parent=1 // pred_check
      _
    $region3: #{tpu_custom_call.1} parent=1 // pred_check_branch
      %11 = sbr.rel (0) target = $region5
    $region4: #{tpu_custom_call.1} parent=1 // pred_region
      %s12 = sadd.s32 0, 0
      %s13 = smul.u32 48, %s12
      %p14 = scmp.lt.s32.totalorder %s13, 47
      %s15 = scalar_select %p14, %s13, 47
      %s16 = smul.addr %s15, 8
      %s17 = scalar_lea.vmem %s0, %s16
      %s18 = sadd.s32 0, 0
      %s19 = smul.u32 48, %s18
    $region5: #{tpu_custom_call.1} parent=1 // pred_fallthru
      _
    // Predicated region
    $region6: #{tpu_custom_call.1} parent=1 // pred_check
      _
    $region7: #{tpu_custom_call.1} parent=1 // pred_check_branch
      %21 = sbr.rel (0) target = $region9
    $region8: #{tpu_custom_call.1} parent=1 // pred_region
      _
    $region9: #{tpu_custom_call.1} parent=1 // pred_fallthru
      _
    // Predicated region
    $region10: #{tpu_custom_call.1} parent=1 // pred_check
      _
    $region11: #{tpu_custom_call.1} parent=1 // pred_check_branch
      %23 = sbr.rel (0) target = $region13
    $region12: #{tpu_custom_call.1} parent=1 // pred_region
      %s24 = sadd.s32 0, 0
      %s25 = smul.u32 48, %s24
      %s27 = ssub.s32 18432, 18432
      %28 = vsyncadd [#allocation3], %s27
      %s29 = smul.addr %s25, 3
      %s30 = smul.addr %s29, 128
      %s31 = scalar_lea.hbm %s2, %s30
      %s32 = sshll.u32 [#allocation2], 4
      %s33 = int_to_ptr.vmem [resolvable:$true] %s32
      %38 = dma.hbm_to_vmem [thread:$0]  %s31, 18432, %s33, [#allocation3], 384, 384, 24
    $region13: #{tpu_custom_call.1} parent=1 // pred_fallthru
      _
    // Predicated region
    $region14: #{tpu_custom_call.1} parent=1 // pred_check
      _
    $region15: #{tpu_custom_call.1} parent=1 // pred_check_branch
      %40 = sbr.rel (0) target = $region17
    $region16: #{tpu_custom_call.1} parent=1 // pred_region
      %41 = dma.done [#allocation3], 18432
    $region17: #{tpu_custom_call.1} parent=1 // pred_fallthru
      _
    %s42 = sadd.s32 0, 0
    %s43 = smul.u32 48, %s42
    %p44 = scmp.lt.s32.totalorder %s43, 47
    %s45 = scalar_select %p44, %s43, 47
    %s46 = smul.addr %s45, 8
    %s47 = scalar_lea.vmem %s0, %s46
    %s48 = sadd.s32 0, 0
    %s49 = smul.u32 48, %s48
    %p50 = scmp.lt.s32.totalorder %s49, 47
    %s51 = scalar_select %p50, %s49, 47
    %s52 = smul.addr %s51, 8
    %s53 = scalar_lea.vmem %s0, %s52
    %s54 = sadd.s32 0, 0
    %s55 = smul.u32 48, %s54
    %s56 = sadd.s32 0, 0
    %s57 = smul.u32 48, %s56
    %p58 = scmp.eq.s32.totalorder 0, 0
    // Predicated region
    $region18: #{tpu_custom_call.1} parent=1 // pred_check
      %p59 = pneg %p58
    $region19: #{tpu_custom_call.1} parent=1 // pred_check_branch
      %61 = sbr.rel (%p59) target = $region21
    $region20: #{tpu_custom_call.1} parent=1 // pred_region
      %vm62 = vcmask 0
      %63 = vst.msk [vmem:[#allocation5] sm:$0x1] %vm62, 0.0
    $region21: #{tpu_custom_call.1} parent=1 // pred_fallthru
      _
    %v64 = vld [vmem:[#allocation2] sm:$0xff]
    %v65 = vld [vmem:[#allocation2 + $0x8] sm:$0xff]
    %v66 = vld [vmem:[#allocation2 + $0x10] sm:$0xff]
    %v67 = vld [vmem:[#allocation2 + $0x18] sm:$0xff]
    %v68 = vld [vmem:[#allocation2 + $0x20] sm:$0xff]
    %v69 = vld [vmem:[#allocation2 + $0x28] sm:$0xff]
    %v70 = vld [vmem:[#allocation2 + $0x30] sm:$0xff]
    %v71 = vld [vmem:[#allocation2 + $0x38] sm:$0xff]
    %v72 = vld [vmem:[#allocation2 + $0x40] sm:$0xff]
    %v73 = vld [vmem:[#allocation2 + $0x48] sm:$0xff]
    %v74 = vld [vmem:[#allocation2 + $0x50] sm:$0xff]
    %v75 = vld [vmem:[#allocation2 + $0x58] sm:$0xff]
    %v76 = vld [vmem:[#allocation2 + $0x60] sm:$0xff]
    %v77 = vld [vmem:[#allocation2 + $0x68] sm:$0xff]
    %v78 = vld [vmem:[#allocation2 + $0x70] sm:$0xff]
    %v79 = vld [vmem:[#allocation2 + $0x78] sm:$0xff]
    %v80 = vld [vmem:[#allocation2 + $0x80] sm:$0xff]
    %v81 = vld [vmem:[#allocation2 + $0x88] sm:$0xff]
    %v82 = vld [vmem:[#allocation2 + $0x90] sm:$0xff]
    %v83 = vld [vmem:[#allocation2 + $0x98] sm:$0xff]
    %v84 = vld [vmem:[#allocation2 + $0xa0] sm:$0xff]
    %v85 = vld [vmem:[#allocation2 + $0xa8] sm:$0xff]
    %v86 = vld [vmem:[#allocation2 + $0xb0] sm:$0xff]
    %v87 = vld [vmem:[#allocation2 + $0xb8] sm:$0xff]
    %v88 = vld [vmem:[#allocation2 + $0xc0] sm:$0xff]
    %v89 = vld [vmem:[#allocation2 + $0xc8] sm:$0xff]
    %v90 = vld [vmem:[#allocation2 + $0xd0] sm:$0xff]
    %v91 = vld [vmem:[#allocation2 + $0xd8] sm:$0xff]
    %v92 = vld [vmem:[#allocation2 + $0xe0] sm:$0xff]
    %v93 = vld [vmem:[#allocation2 + $0xe8] sm:$0xff]
    %v94 = vld [vmem:[#allocation2 + $0xf0] sm:$0xff]
    %v95 = vld [vmem:[#allocation2 + $0xf8] sm:$0xff]
    %v96 = vld [vmem:[#allocation2 + $0x100] sm:$0xff]
    %v97 = vld [vmem:[#allocation2 + $0x108] sm:$0xff]
    %v98 = vld [vmem:[#allocation2 + $0x110] sm:$0xff]
    %v99 = vld [vmem:[#allocation2 + $0x118] sm:$0xff]
    %v100 = vld [vmem:[#allocation2 + $0x120] sm:$0xff]
    %v101 = vld [vmem:[#allocation2 + $0x128] sm:$0xff]
    %v102 = vld [vmem:[#allocation2 + $0x130] sm:$0xff]
    %v103 = vld [vmem:[#allocation2 + $0x138] sm:$0xff]
    %v104 = vld [vmem:[#allocation2 + $0x140] sm:$0xff]
    %v105 = vld [vmem:[#allocation2 + $0x148] sm:$0xff]
    %v106 = vld [vmem:[#allocation2 + $0x150] sm:$0xff]
    %v107 = vld [vmem:[#allocation2 + $0x158] sm:$0xff]
    %v108 = vld [vmem:[#allocation2 + $0x160] sm:$0xff]
    %v109 = vld [vmem:[#allocation2 + $0x168] sm:$0xff]
    %v110 = vld [vmem:[#allocation2 + $0x170] sm:$0xff]
    %v111 = vld [vmem:[#allocation2 + $0x178] sm:$0xff]
    %v112 = vld [vmem:[#allocation2 + $0x180] sm:$0xff]
    %v113 = vld [vmem:[#allocation2 + $0x188] sm:$0xff]
    %v114 = vld [vmem:[#allocation2 + $0x190] sm:$0xff]
    %v115 = vld [vmem:[#allocation2 + $0x198] sm:$0xff]
    %v116 = vld [vmem:[#allocation2 + $0x1a0] sm:$0xff]
    %v117 = vld [vmem:[#allocation2 + $0x1a8] sm:$0xff]
    %v118 = vld [vmem:[#allocation2 + $0x1b0] sm:$0xff]
    %v119 = vld [vmem:[#allocation2 + $0x1b8] sm:$0xff]
    %v120 = vld [vmem:[#allocation2 + $0x1c0] sm:$0xff]
    %v121 = vld [vmem:[#allocation2 + $0x1c8] sm:$0xff]
    %v122 = vld [vmem:[#allocation2 + $0x1d0] sm:$0xff]
    %v123 = vld [vmem:[#allocation2 + $0x1d8] sm:$0xff]
    %v124 = vld [vmem:[#allocation2 + $0x1e0] sm:$0xff]
    %v125 = vld [vmem:[#allocation2 + $0x1e8] sm:$0xff]
    %v126 = vld [vmem:[#allocation2 + $0x1f0] sm:$0xff]
    %v127 = vld [vmem:[#allocation2 + $0x1f8] sm:$0xff]
    %v128 = vld [vmem:[#allocation2 + $0x200] sm:$0xff]
    %v129 = vld [vmem:[#allocation2 + $0x208] sm:$0xff]
    %v130 = vld [vmem:[#allocation2 + $0x210] sm:$0xff]
    %v131 = vld [vmem:[#allocation2 + $0x218] sm:$0xff]
    %v132 = vld [vmem:[#allocation2 + $0x220] sm:$0xff]
    %v133 = vld [vmem:[#allocation2 + $0x228] sm:$0xff]
    %v134 = vld [vmem:[#allocation2 + $0x230] sm:$0xff]
    %v135 = vld [vmem:[#allocation2 + $0x238] sm:$0xff]
    %v136 = vld [vmem:[#allocation2 + $0x240] sm:$0xff]
    %v137 = vld [vmem:[#allocation2 + $0x248] sm:$0xff]
    %v138 = vld [vmem:[#allocation2 + $0x250] sm:$0xff]
    %v139 = vld [vmem:[#allocation2 + $0x258] sm:$0xff]
    %v140 = vld [vmem:[#allocation2 + $0x260] sm:$0xff]
    %v141 = vld [vmem:[#allocation2 + $0x268] sm:$0xff]
    %v142 = vld [vmem:[#allocation2 + $0x270] sm:$0xff]
    %v143 = vld [vmem:[#allocation2 + $0x278] sm:$0xff]
    %v144 = vld [vmem:[#allocation2 + $0x280] sm:$0xff]
    %v145 = vld [vmem:[#allocation2 + $0x288] sm:$0xff]
    %v146 = vld [vmem:[#allocation2 + $0x290] sm:$0xff]
    %v147 = vld [vmem:[#allocation2 + $0x298] sm:$0xff]
    %v148 = vld [vmem:[#allocation2 + $0x2a0] sm:$0xff]
    %v149 = vld [vmem:[#allocation2 + $0x2a8] sm:$0xff]
    %v150 = vld [vmem:[#allocation2 + $0x2b0] sm:$0xff]
    %v151 = vld [vmem:[#allocation2 + $0x2b8] sm:$0xff]
    %v152 = vld [vmem:[#allocation2 + $0x2c0] sm:$0xff]
    %v153 = vld [vmem:[#allocation2 + $0x2c8] sm:$0xff]
    %v154 = vld [vmem:[#allocation2 + $0x2d0] sm:$0xff]
    %v155 = vld [vmem:[#allocation2 + $0x2d8] sm:$0xff]
    %v156 = vld [vmem:[#allocation2 + $0x2e0] sm:$0xff]
    %v157 = vld [vmem:[#allocation2 + $0x2e8] sm:$0xff]
    %v158 = vld [vmem:[#allocation2 + $0x2f0] sm:$0xff]
    %v159 = vld [vmem:[#allocation2 + $0x2f8] sm:$0xff]
    %v160 = vld [vmem:[#allocation2 + $0x300] sm:$0xff]
    %v161 = vld [vmem:[#allocation2 + $0x308] sm:$0xff]
    %v162 = vld [vmem:[#allocation2 + $0x310] sm:$0xff]
    %v163 = vld [vmem:[#allocation2 + $0x318] sm:$0xff]
    %v164 = vld [vmem:[#allocation2 + $0x320] sm:$0xff]
    %v165 = vld [vmem:[#allocation2 + $0x328] sm:$0xff]
    %v166 = vld [vmem:[#allocation2 + $0x330] sm:$0xff]
    %v167 = vld [vmem:[#allocation2 + $0x338] sm:$0xff]
    %v168 = vld [vmem:[#allocation2 + $0x340] sm:$0xff]
    %v169 = vld [vmem:[#allocation2 + $0x348] sm:$0xff]
    %v170 = vld [vmem:[#allocation2 + $0x350] sm:$0xff]
    %v171 = vld [vmem:[#allocation2 + $0x358] sm:$0xff]
    %v172 = vld [vmem:[#allocation2 + $0x360] sm:$0xff]
    %v173 = vld [vmem:[#allocation2 + $0x368] sm:$0xff]
    %v174 = vld [vmem:[#allocation2 + $0x370] sm:$0xff]
    %v175 = vld [vmem:[#allocation2 + $0x378] sm:$0xff]
    %v176 = vld [vmem:[#allocation2 + $0x380] sm:$0xff]
    %v177 = vld [vmem:[#allocation2 + $0x388] sm:$0xff]
    %v178 = vld [vmem:[#allocation2 + $0x390] sm:$0xff]
    %v179 = vld [vmem:[#allocation2 + $0x398] sm:$0xff]
    %v180 = vld [vmem:[#allocation2 + $0x3a0] sm:$0xff]
    %v181 = vld [vmem:[#allocation2 + $0x3a8] sm:$0xff]
    %v182 = vld [vmem:[#allocation2 + $0x3b0] sm:$0xff]
    %v183 = vld [vmem:[#allocation2 + $0x3b8] sm:$0xff]
    %v184 = vld [vmem:[#allocation2 + $0x3c0] sm:$0xff]
    %v185 = vld [vmem:[#allocation2 + $0x3c8] sm:$0xff]
    %v186 = vld [vmem:[#allocation2 + $0x3d0] sm:$0xff]
    %v187 = vld [vmem:[#allocation2 + $0x3d8] sm:$0xff]
    %v188 = vld [vmem:[#allocation2 + $0x3e0] sm:$0xff]
    %v189 = vld [vmem:[#allocation2 + $0x3e8] sm:$0xff]
    %v190 = vld [vmem:[#allocation2 + $0x3f0] sm:$0xff]
    %v191 = vld [vmem:[#allocation2 + $0x3f8] sm:$0xff]
    %v192 = vld [vmem:[#allocation2 + $0x400] sm:$0xff]
    %v193 = vld [vmem:[#allocation2 + $0x408] sm:$0xff]
    %v194 = vld [vmem:[#allocation2 + $0x410] sm:$0xff]
    %v195 = vld [vmem:[#allocation2 + $0x418] sm:$0xff]
    %v196 = vld [vmem:[#allocation2 + $0x420] sm:$0xff]
    %v197 = vld [vmem:[#allocation2 + $0x428] sm:$0xff]
    %v198 = vld [vmem:[#allocation2 + $0x430] sm:$0xff]
    %v199 = vld [vmem:[#allocation2 + $0x438] sm:$0xff]
    %v200 = vld [vmem:[#allocation2 + $0x440] sm:$0xff]
    %v201 = vld [vmem:[#allocation2 + $0x448] sm:$0xff]
    %v202 = vld [vmem:[#allocation2 + $0x450] sm:$0xff]
    %v203 = vld [vmem:[#allocation2 + $0x458] sm:$0xff]
    %v204 = vld [vmem:[#allocation2 + $0x460] sm:$0xff]
    %v205 = vld [vmem:[#allocation2 + $0x468] sm:$0xff]
    %v206 = vld [vmem:[#allocation2 + $0x470] sm:$0xff]
    %v207 = vld [vmem:[#allocation2 + $0x478] sm:$0xff]
    %v208 = vld [vmem:[%s53] sm:$0xff]
    %v209 = vld [vmem:[%s53 + $0x8] sm:$0xff]
    %v210 = vld [vmem:[%s53 + $0x10] sm:$0xff]
    %v211 = vld [vmem:[%s53 + $0x18] sm:$0xff]
    %v212 = vld [vmem:[%s53 + $0x20] sm:$0xff]
    %v213 = vld [vmem:[%s53 + $0x28] sm:$0xff]
    %v214 = vld [vmem:[%s53 + $0x30] sm:$0xff]
    %v215 = vld [vmem:[%s53 + $0x38] sm:$0xff]
    %v216 = vld [vmem:[%s53 + $0x40] sm:$0xff]
    %v217 = vld [vmem:[%s53 + $0x48] sm:$0xff]
    %v218 = vld [vmem:[%s53 + $0x50] sm:$0xff]
    %v219 = vld [vmem:[%s53 + $0x58] sm:$0xff]
    %v220 = vld [vmem:[%s53 + $0x60] sm:$0xff]
    %v221 = vld [vmem:[%s53 + $0x68] sm:$0xff]
    %v222 = vld [vmem:[%s53 + $0x70] sm:$0xff]
    %v223 = vld [vmem:[%s53 + $0x78] sm:$0xff]
    %v224 = vld [vmem:[%s53 + $0x80] sm:$0xff]
    %v225 = vld [vmem:[%s53 + $0x88] sm:$0xff]
    %v226 = vld [vmem:[%s53 + $0x90] sm:$0xff]
    %v227 = vld [vmem:[%s53 + $0x98] sm:$0xff]
    %v228 = vld [vmem:[%s53 + $0xa0] sm:$0xff]
    %v229 = vld [vmem:[%s53 + $0xa8] sm:$0xff]
    %v230 = vld [vmem:[%s53 + $0xb0] sm:$0xff]
    %v231 = vld [vmem:[%s53 + $0xb8] sm:$0xff]
    %v232 = vld [vmem:[%s53 + $0xc0] sm:$0xff]
    %v233 = vld [vmem:[%s53 + $0xc8] sm:$0xff]
    %v234 = vld [vmem:[%s53 + $0xd0] sm:$0xff]
    %v235 = vld [vmem:[%s53 + $0xd8] sm:$0xff]
    %v236 = vld [vmem:[%s53 + $0xe0] sm:$0xff]
    %v237 = vld [vmem:[%s53 + $0xe8] sm:$0xff]
    %v238 = vld [vmem:[%s53 + $0xf0] sm:$0xff]
    %v239 = vld [vmem:[%s53 + $0xf8] sm:$0xff]
    %v240 = vld [vmem:[%s53 + $0x100] sm:$0xff]
    %v241 = vld [vmem:[%s53 + $0x108] sm:$0xff]
    %v242 = vld [vmem:[%s53 + $0x110] sm:$0xff]
    %v243 = vld [vmem:[%s53 + $0x118] sm:$0xff]
    %v244 = vld [vmem:[%s53 + $0x120] sm:$0xff]
    %v245 = vld [vmem:[%s53 + $0x128] sm:$0xff]
    %v246 = vld [vmem:[%s53 + $0x130] sm:$0xff]
    %v247 = vld [vmem:[%s53 + $0x138] sm:$0xff]
    %v248 = vld [vmem:[%s53 + $0x140] sm:$0xff]
    %v249 = vld [vmem:[%s53 + $0x148] sm:$0xff]
    %v250 = vld [vmem:[%s53 + $0x150] sm:$0xff]
    %v251 = vld [vmem:[%s53 + $0x158] sm:$0xff]
    %v252 = vld [vmem:[%s53 + $0x160] sm:$0xff]
    %v253 = vld [vmem:[%s53 + $0x168] sm:$0xff]
    %v254 = vld [vmem:[%s53 + $0x170] sm:$0xff]
    %v255 = vld [vmem:[%s53 + $0x178] sm:$0xff]
    %257 = vset.pattern.permute.xlu0 0
    %258 = vperm.xlu0 %257, %v208
    %v259 = vpop.permute.xlu0 %258
    %262 = vset.pattern.permute.xlu0 0
    %263 = vperm.xlu0 %262, %v209
    %v264 = vpop.permute.xlu0 %263
    %267 = vset.pattern.permute.xlu0 0
    %268 = vperm.xlu0 %267, %v210
    %v269 = vpop.permute.xlu0 %268
    %272 = vset.pattern.permute.xlu0 0
    %273 = vperm.xlu0 %272, %v211
    %v274 = vpop.permute.xlu0 %273
    %277 = vset.pattern.permute.xlu0 0
    %278 = vperm.xlu0 %277, %v212
    %v279 = vpop.permute.xlu0 %278
    %282 = vset.pattern.permute.xlu0 0
    %283 = vperm.xlu0 %282, %v213
    %v284 = vpop.permute.xlu0 %283
    %287 = vset.pattern.permute.xlu0 0
    %288 = vperm.xlu0 %287, %v214
    %v289 = vpop.permute.xlu0 %288
    %292 = vset.pattern.permute.xlu0 0
    %293 = vperm.xlu0 %292, %v215
    %v294 = vpop.permute.xlu0 %293
    %297 = vset.pattern.permute.xlu0 0
    %298 = vperm.xlu0 %297, %v216
    %v299 = vpop.permute.xlu0 %298
    %302 = vset.pattern.permute.xlu0 0
    %303 = vperm.xlu0 %302, %v217
    %v304 = vpop.permute.xlu0 %303
    %307 = vset.pattern.permute.xlu0 0
    %308 = vperm.xlu0 %307, %v218
    %v309 = vpop.permute.xlu0 %308
    %312 = vset.pattern.permute.xlu0 0
    %313 = vperm.xlu0 %312, %v219
    %v314 = vpop.permute.xlu0 %313
    %317 = vset.pattern.permute.xlu0 0
    %318 = vperm.xlu0 %317, %v220
    %v319 = vpop.permute.xlu0 %318
    %322 = vset.pattern.permute.xlu0 0
    %323 = vperm.xlu0 %322, %v221
    %v324 = vpop.permute.xlu0 %323
    %327 = vset.pattern.permute.xlu0 0
    %328 = vperm.xlu0 %327, %v222
    %v329 = vpop.permute.xlu0 %328
    %332 = vset.pattern.permute.xlu0 0
    %333 = vperm.xlu0 %332, %v223
    %v334 = vpop.permute.xlu0 %333
    %337 = vset.pattern.permute.xlu0 0
    %338 = vperm.xlu0 %337, %v224
    %v339 = vpop.permute.xlu0 %338
    %342 = vset.pattern.permute.xlu0 0
    %343 = vperm.xlu0 %342, %v225
    %v344 = vpop.permute.xlu0 %343
    %347 = vset.pattern.permute.xlu0 0
    %348 = vperm.xlu0 %347, %v226
    %v349 = vpop.permute.xlu0 %348
    %352 = vset.pattern.permute.xlu0 0
    %353 = vperm.xlu0 %352, %v227
    %v354 = vpop.permute.xlu0 %353
    %357 = vset.pattern.permute.xlu0 0
    %358 = vperm.xlu0 %357, %v228
    %v359 = vpop.permute.xlu0 %358
    %362 = vset.pattern.permute.xlu0 0
    %363 = vperm.xlu0 %362, %v229
    %v364 = vpop.permute.xlu0 %363
    %367 = vset.pattern.permute.xlu0 0
    %368 = vperm.xlu0 %367, %v230
    %v369 = vpop.permute.xlu0 %368
    %372 = vset.pattern.permute.xlu0 0
    %373 = vperm.xlu0 %372, %v231
    %v374 = vpop.permute.xlu0 %373
    %377 = vset.pattern.permute.xlu0 0
    %378 = vperm.xlu0 %377, %v232
    %v379 = vpop.permute.xlu0 %378
    %382 = vset.pattern.permute.xlu0 0
    %383 = vperm.xlu0 %382, %v233
    %v384 = vpop.permute.xlu0 %383
    %387 = vset.pattern.permute.xlu0 0
    %388 = vperm.xlu0 %387, %v234
    %v389 = vpop.permute.xlu0 %388
    %392 = vset.pattern.permute.xlu0 0
    %393 = vperm.xlu0 %392, %v235
    %v394 = vpop.permute.xlu0 %393
    %397 = vset.pattern.permute.xlu0 0
    %398 = vperm.xlu0 %397, %v236
    %v399 = vpop.permute.xlu0 %398
    %402 = vset.pattern.permute.xlu0 0
    %403 = vperm.xlu0 %402, %v237
    %v404 = vpop.permute.xlu0 %403
    %407 = vset.pattern.permute.xlu0 0
    %408 = vperm.xlu0 %407, %v238
    %v409 = vpop.permute.xlu0 %408
    %412 = vset.pattern.permute.xlu0 0
    %413 = vperm.xlu0 %412, %v239
    %v414 = vpop.permute.xlu0 %413
    %417 = vset.pattern.permute.xlu0 0
    %418 = vperm.xlu0 %417, %v240
    %v419 = vpop.permute.xlu0 %418
    %422 = vset.pattern.permute.xlu0 0
    %423 = vperm.xlu0 %422, %v241
    %v424 = vpop.permute.xlu0 %423
    %427 = vset.pattern.permute.xlu0 0
    %428 = vperm.xlu0 %427, %v242
    %v429 = vpop.permute.xlu0 %428
    %432 = vset.pattern.permute.xlu0 0
    %433 = vperm.xlu0 %432, %v243
    %v434 = vpop.permute.xlu0 %433
    %437 = vset.pattern.permute.xlu0 0
    %438 = vperm.xlu0 %437, %v244
    %v439 = vpop.permute.xlu0 %438
    %442 = vset.pattern.permute.xlu0 0
    %443 = vperm.xlu0 %442, %v245
    %v444 = vpop.permute.xlu0 %443
    %447 = vset.pattern.permute.xlu0 0
    %448 = vperm.xlu0 %447, %v246
    %v449 = vpop.permute.xlu0 %448
    %452 = vset.pattern.permute.xlu0 0
    %453 = vperm.xlu0 %452, %v247
    %v454 = vpop.permute.xlu0 %453
    %457 = vset.pattern.permute.xlu0 0
    %458 = vperm.xlu0 %457, %v248
    %v459 = vpop.permute.xlu0 %458
    %462 = vset.pattern.permute.xlu0 0
    %463 = vperm.xlu0 %462, %v249
    %v464 = vpop.permute.xlu0 %463
    %467 = vset.pattern.permute.xlu0 0
    %468 = vperm.xlu0 %467, %v250
    %v469 = vpop.permute.xlu0 %468
    %472 = vset.pattern.permute.xlu0 0
    %473 = vperm.xlu0 %472, %v251
    %v474 = vpop.permute.xlu0 %473
    %477 = vset.pattern.permute.xlu0 0
    %478 = vperm.xlu0 %477, %v252
    %v479 = vpop.permute.xlu0 %478
    %482 = vset.pattern.permute.xlu0 0
    %483 = vperm.xlu0 %482, %v253
    %v484 = vpop.permute.xlu0 %483
    %487 = vset.pattern.permute.xlu0 0
    %488 = vperm.xlu0 %487, %v254
    %v489 = vpop.permute.xlu0 %488
    %492 = vset.pattern.permute.xlu0 0
    %493 = vperm.xlu0 %492, %v255
    %v494 = vpop.permute.xlu0 %493
    %v496 = vmul.f32 %v64, %v259
    %v497 = vmul.f32 %v65, %v259
    %v498 = vmul.f32 %v66, %v259
    %v499 = vmul.f32 %v67, %v264
    %v500 = vmul.f32 %v68, %v264
    %v501 = vmul.f32 %v69, %v264
    %v502 = vmul.f32 %v70, %v269
    %v503 = vmul.f32 %v71, %v269
    %v504 = vmul.f32 %v72, %v269
    %v505 = vmul.f32 %v73, %v274
    %v506 = vmul.f32 %v74, %v274
    %v507 = vmul.f32 %v75, %v274
    %v508 = vmul.f32 %v76, %v279
    %v509 = vmul.f32 %v77, %v279
    %v510 = vmul.f32 %v78, %v279
    %v511 = vmul.f32 %v79, %v284
    %v512 = vmul.f32 %v80, %v284
    %v513 = vmul.f32 %v81, %v284
    %v514 = vmul.f32 %v82, %v289
    %v515 = vmul.f32 %v83, %v289
    %v516 = vmul.f32 %v84, %v289
    %v517 = vmul.f32 %v85, %v294
    %v518 = vmul.f32 %v86, %v294
    %v519 = vmul.f32 %v87, %v294
    %v520 = vmul.f32 %v88, %v299
    %v521 = vmul.f32 %v89, %v299
    %v522 = vmul.f32 %v90, %v299
    %v523 = vmul.f32 %v91, %v304
    %v524 = vmul.f32 %v92, %v304
    %v525 = vmul.f32 %v93, %v304
    %v526 = vmul.f32 %v94, %v309
    %v527 = vmul.f32 %v95, %v309
    %v528 = vmul.f32 %v96, %v309
    %v529 = vmul.f32 %v97, %v314
    %v530 = vmul.f32 %v98, %v314
    %v531 = vmul.f32 %v99, %v314
    %v532 = vmul.f32 %v100, %v319
    %v533 = vmul.f32 %v101, %v319
    %v534 = vmul.f32 %v102, %v319
    %v535 = vmul.f32 %v103, %v324
    %v536 = vmul.f32 %v104, %v324
    %v537 = vmul.f32 %v105, %v324
    %v538 = vmul.f32 %v106, %v329
    %v539 = vmul.f32 %v107, %v329
    %v540 = vmul.f32 %v108, %v329
    %v541 = vmul.f32 %v109, %v334
    %v542 = vmul.f32 %v110, %v334
    %v543 = vmul.f32 %v111, %v334
    %v544 = vmul.f32 %v112, %v339
    %v545 = vmul.f32 %v113, %v339
    %v546 = vmul.f32 %v114, %v339
    %v547 = vmul.f32 %v115, %v344
    %v548 = vmul.f32 %v116, %v344
    %v549 = vmul.f32 %v117, %v344
    %v550 = vmul.f32 %v118, %v349
    %v551 = vmul.f32 %v119, %v349
    %v552 = vmul.f32 %v120, %v349
    %v553 = vmul.f32 %v121, %v354
    %v554 = vmul.f32 %v122, %v354
    %v555 = vmul.f32 %v123, %v354
    %v556 = vmul.f32 %v124, %v359
    %v557 = vmul.f32 %v125, %v359
    %v558 = vmul.f32 %v126, %v359
    %v559 = vmul.f32 %v127, %v364
    %v560 = vmul.f32 %v128, %v364
    %v561 = vmul.f32 %v129, %v364
    %v562 = vmul.f32 %v130, %v369
    %v563 = vmul.f32 %v131, %v369
    %v564 = vmul.f32 %v132, %v369
    %v565 = vmul.f32 %v133, %v374
    %v566 = vmul.f32 %v134, %v374
    %v567 = vmul.f32 %v135, %v374
    %v568 = vmul.f32 %v136, %v379
    %v569 = vmul.f32 %v137, %v379
    %v570 = vmul.f32 %v138, %v379
    %v571 = vmul.f32 %v139, %v384
    %v572 = vmul.f32 %v140, %v384
    %v573 = vmul.f32 %v141, %v384
    %v574 = vmul.f32 %v142, %v389
    %v575 = vmul.f32 %v143, %v389
    %v576 = vmul.f32 %v144, %v389
    %v577 = vmul.f32 %v145, %v394
    %v578 = vmul.f32 %v146, %v394
    %v579 = vmul.f32 %v147, %v394
    %v580 = vmul.f32 %v148, %v399
    %v581 = vmul.f32 %v149, %v399
    %v582 = vmul.f32 %v150, %v399
    %v583 = vmul.f32 %v151, %v404
    %v584 = vmul.f32 %v152, %v404
    %v585 = vmul.f32 %v153, %v404
    %v586 = vmul.f32 %v154, %v409
    %v587 = vmul.f32 %v155, %v409
    %v588 = vmul.f32 %v156, %v409
    %v589 = vmul.f32 %v157, %v414
    %v590 = vmul.f32 %v158, %v414
    %v591 = vmul.f32 %v159, %v414
    %v592 = vmul.f32 %v160, %v419
    %v593 = vmul.f32 %v161, %v419
    %v594 = vmul.f32 %v162, %v419
    %v595 = vmul.f32 %v163, %v424
    %v596 = vmul.f32 %v164, %v424
    %v597 = vmul.f32 %v165, %v424
    %v598 = vmul.f32 %v166, %v429
    %v599 = vmul.f32 %v167, %v429
    %v600 = vmul.f32 %v168, %v429
    %v601 = vmul.f32 %v169, %v434
    %v602 = vmul.f32 %v170, %v434
    %v603 = vmul.f32 %v171, %v434
    %v604 = vmul.f32 %v172, %v439
    %v605 = vmul.f32 %v173, %v439
    %v606 = vmul.f32 %v174, %v439
    %v607 = vmul.f32 %v175, %v444
    %v608 = vmul.f32 %v176, %v444
    %v609 = vmul.f32 %v177, %v444
    %v610 = vmul.f32 %v178, %v449
    %v611 = vmul.f32 %v179, %v449
    %v612 = vmul.f32 %v180, %v449
    %v613 = vmul.f32 %v181, %v454
    %v614 = vmul.f32 %v182, %v454
    %v615 = vmul.f32 %v183, %v454
    %v616 = vmul.f32 %v184, %v459
    %v617 = vmul.f32 %v185, %v459
    %v618 = vmul.f32 %v186, %v459
    %v619 = vmul.f32 %v187, %v464
    %v620 = vmul.f32 %v188, %v464
    %v621 = vmul.f32 %v189, %v464
    %v622 = vmul.f32 %v190, %v469
    %v623 = vmul.f32 %v191, %v469
    %v624 = vmul.f32 %v192, %v469
    %v625 = vmul.f32 %v193, %v474
    %v626 = vmul.f32 %v194, %v474
    %v627 = vmul.f32 %v195, %v474
    %v628 = vmul.f32 %v196, %v479
    %v629 = vmul.f32 %v197, %v479
    %v630 = vmul.f32 %v198, %v479
    %v631 = vmul.f32 %v199, %v484
    %v632 = vmul.f32 %v200, %v484
    %v633 = vmul.f32 %v201, %v484
    %v634 = vmul.f32 %v202, %v489
    %v635 = vmul.f32 %v203, %v489
    %v636 = vmul.f32 %v204, %v489
    %v637 = vmul.f32 %v205, %v494
    %v638 = vmul.f32 %v206, %v494
    %v639 = vmul.f32 %v207, %v494
    %v640 = vadd.f32 %v496, %v499
    %v641 = vadd.f32 %v640, %v502
    %v642 = vadd.f32 %v641, %v505
    %v643 = vadd.f32 %v642, %v508
    %v644 = vadd.f32 %v643, %v511
    %v645 = vadd.f32 %v644, %v514
    %v646 = vadd.f32 %v645, %v517
    %v647 = vadd.f32 %v646, %v520
    %v648 = vadd.f32 %v647, %v523
    %v649 = vadd.f32 %v648, %v526
    %v650 = vadd.f32 %v649, %v529
    %v651 = vadd.f32 %v650, %v532
    %v652 = vadd.f32 %v651, %v535
    %v653 = vadd.f32 %v652, %v538
    %v654 = vadd.f32 %v653, %v541
    %v655 = vadd.f32 %v654, %v544
    %v656 = vadd.f32 %v655, %v547
    %v657 = vadd.f32 %v656, %v550
    %v658 = vadd.f32 %v657, %v553
    %v659 = vadd.f32 %v658, %v556
    %v660 = vadd.f32 %v659, %v559
    %v661 = vadd.f32 %v660, %v562
    %v662 = vadd.f32 %v661, %v565
    %v663 = vadd.f32 %v662, %v568
    %v664 = vadd.f32 %v663, %v571
    %v665 = vadd.f32 %v664, %v574
    %v666 = vadd.f32 %v665, %v577
    %v667 = vadd.f32 %v666, %v580
    %v668 = vadd.f32 %v667, %v583
    %v669 = vadd.f32 %v668, %v586
    %v670 = vadd.f32 %v669, %v589
    %v671 = vadd.f32 %v670, %v592
    %v672 = vadd.f32 %v671, %v595
    %v673 = vadd.f32 %v672, %v598
    %v674 = vadd.f32 %v673, %v601
    %v675 = vadd.f32 %v674, %v604
    %v676 = vadd.f32 %v675, %v607
    %v677 = vadd.f32 %v676, %v610
    %v678 = vadd.f32 %v677, %v613
    %v679 = vadd.f32 %v678, %v616
    %v680 = vadd.f32 %v679, %v619
    %v681 = vadd.f32 %v680, %v622
    %v682 = vadd.f32 %v681, %v625
    %v683 = vadd.f32 %v682, %v628
    %v684 = vadd.f32 %v683, %v631
    %v685 = vadd.f32 %v684, %v634
    %v686 = vadd.f32 %v685, %v637
    %v687 = vrot.slane %v686, 4
    %v688 = vadd.f32 %v686, %v687
    %v689 = vrot.slane %v688, 2
    %v690 = vadd.f32 %v688, %v689
    %v691 = vrot.slane %v690, 1
    %v692 = vadd.f32 %v690, %v691
    %v693 = vadd.f32 %v497, %v500
    %v694 = vadd.f32 %v693, %v503
    %v695 = vadd.f32 %v694, %v506
    %v696 = vadd.f32 %v695, %v509
    %v697 = vadd.f32 %v696, %v512
    %v698 = vadd.f32 %v697, %v515
    %v699 = vadd.f32 %v698, %v518
    %v700 = vadd.f32 %v699, %v521
    %v701 = vadd.f32 %v700, %v524
    %v702 = vadd.f32 %v701, %v527
    %v703 = vadd.f32 %v702, %v530
    %v704 = vadd.f32 %v703, %v533
    %v705 = vadd.f32 %v704, %v536
    %v706 = vadd.f32 %v705, %v539
    %v707 = vadd.f32 %v706, %v542
    %v708 = vadd.f32 %v707, %v545
    %v709 = vadd.f32 %v708, %v548
    %v710 = vadd.f32 %v709, %v551
    %v711 = vadd.f32 %v710, %v554
    %v712 = vadd.f32 %v711, %v557
    %v713 = vadd.f32 %v712, %v560
    %v714 = vadd.f32 %v713, %v563
    %v715 = vadd.f32 %v714, %v566
    %v716 = vadd.f32 %v715, %v569
    %v717 = vadd.f32 %v716, %v572
    %v718 = vadd.f32 %v717, %v575
    %v719 = vadd.f32 %v718, %v578
    %v720 = vadd.f32 %v719, %v581
    %v721 = vadd.f32 %v720, %v584
    %v722 = vadd.f32 %v721, %v587
    %v723 = vadd.f32 %v722, %v590
    %v724 = vadd.f32 %v723, %v593
    %v725 = vadd.f32 %v724, %v596
    %v726 = vadd.f32 %v725, %v599
    %v727 = vadd.f32 %v726, %v602
    %v728 = vadd.f32 %v727, %v605
    %v729 = vadd.f32 %v728, %v608
    %v730 = vadd.f32 %v729, %v611
    %v731 = vadd.f32 %v730, %v614
    %v732 = vadd.f32 %v731, %v617
    %v733 = vadd.f32 %v732, %v620
    %v734 = vadd.f32 %v733, %v623
    %v735 = vadd.f32 %v734, %v626
    %v736 = vadd.f32 %v735, %v629
    %v737 = vadd.f32 %v736, %v632
    %v738 = vadd.f32 %v737, %v635
    %v739 = vadd.f32 %v738, %v638
    %v740 = vrot.slane %v739, 4
    %v741 = vadd.f32 %v739, %v740
    %v742 = vrot.slane %v741, 2
    %v743 = vadd.f32 %v741, %v742
    %v744 = vrot.slane %v743, 1
    %v745 = vadd.f32 %v743, %v744
    %v746 = vadd.f32 %v498, %v501
    %v747 = vadd.f32 %v746, %v504
    %v748 = vadd.f32 %v747, %v507
    %v749 = vadd.f32 %v748, %v510
    %v750 = vadd.f32 %v749, %v513
    %v751 = vadd.f32 %v750, %v516
    %v752 = vadd.f32 %v751, %v519
    %v753 = vadd.f32 %v752, %v522
    %v754 = vadd.f32 %v753, %v525
    %v755 = vadd.f32 %v754, %v528
    %v756 = vadd.f32 %v755, %v531
    %v757 = vadd.f32 %v756, %v534
    %v758 = vadd.f32 %v757, %v537
    %v759 = vadd.f32 %v758, %v540
    %v760 = vadd.f32 %v759, %v543
    %v761 = vadd.f32 %v760, %v546
    %v762 = vadd.f32 %v761, %v549
    %v763 = vadd.f32 %v762, %v552
    %v764 = vadd.f32 %v763, %v555
    %v765 = vadd.f32 %v764, %v558
    %v766 = vadd.f32 %v765, %v561
    %v767 = vadd.f32 %v766, %v564
    %v768 = vadd.f32 %v767, %v567
    %v769 = vadd.f32 %v768, %v570
    %v770 = vadd.f32 %v769, %v573
    %v771 = vadd.f32 %v770, %v576
    %v772 = vadd.f32 %v771, %v579
    %v773 = vadd.f32 %v772, %v582
    %v774 = vadd.f32 %v773, %v585
    %v775 = vadd.f32 %v774, %v588
    %v776 = vadd.f32 %v775, %v591
    %v777 = vadd.f32 %v776, %v594
    %v778 = vadd.f32 %v777, %v597
    %v779 = vadd.f32 %v778, %v600
    %v780 = vadd.f32 %v779, %v603
    %v781 = vadd.f32 %v780, %v606
    %v782 = vadd.f32 %v781, %v609
    %v783 = vadd.f32 %v782, %v612
    %v784 = vadd.f32 %v783, %v615
    %v785 = vadd.f32 %v784, %v618
    %v786 = vadd.f32 %v785, %v621
    %v787 = vadd.f32 %v786, %v624
    %v788 = vadd.f32 %v787, %v627
    %v789 = vadd.f32 %v788, %v630
    %v790 = vadd.f32 %v789, %v633
    %v791 = vadd.f32 %v790, %v636
    %v792 = vadd.f32 %v791, %v639
    %v793 = vrot.slane %v792, 4
    %v794 = vadd.f32 %v792, %v793
    %v795 = vrot.slane %v794, 2
    %v796 = vadd.f32 %v794, %v795
    %v797 = vrot.slane %v796, 1
    %v798 = vadd.f32 %v796, %v797
    %v799 = vld [vmem:[#allocation5] sm:$0x1]
    %v800 = vld [vmem:[%s1] sm:$0x7]
    %v802 = vlaneseq
    %v803 = vshrl.u32 %v802, 7
    %v804 = vsub.s32 0, %v803
    %v805 = vrot.slane %v800, %v804
    %v806 = vlaneseq
    %v807 = vshrl.u32 %v806, 7
    %v808 = vsub.s32 1, %v807
    %v809 = vrot.slane %v800, %v808
    %v810 = vlaneseq
    %v811 = vshrl.u32 %v810, 7
    %v812 = vsub.s32 2, %v811
    %v813 = vrot.slane %v800, %v812
    %v817 = vmul.f32 %v692, %v805
    %v818 = vmul.f32 %v745, %v809
    %v819 = vmul.f32 %v798, %v813
    %vm820 = vcmask 1040384
    %v821 = vsel %vm820, %v817, 0.0
    %v822 = vsel %vm820, %v818, 0.0
    %v823 = vadd.f32 %v821, %v822
    %v824 = vsel %vm820, %v819, 0.0
    %v825 = vadd.f32 %v823, %v824
    %826 = vadd.xlane.f32.xlu0 %v825
    %v827 = vpop.xlane.xlu0 %826
    %v828 = vrot.slane %v827, 4
    %v829 = vadd.f32 %v827, %v828
    %v830 = vrot.slane %v829, 2
    %v831 = vadd.f32 %v829, %v830
    %v832 = vrot.slane %v831, 1
    %v833 = vadd.f32 %v831, %v832
    %s834 = vtos %v833
    %v835 = vstv %s834
    %v836 = vadd.f32 %v799, %v835
    %vm837 = vcmask 0
    %838 = vst.msk [vmem:[#allocation5] sm:$0x1] %vm837, %v836
    // Predicated region
    $region22: #{tpu_custom_call.1} parent=1 // pred_check
      _
    $region23: #{tpu_custom_call.1} parent=1 // pred_check_branch
      %840 = sbr.rel (0) target = $region25
    $region24: #{tpu_custom_call.1} parent=1 // pred_region
      %s842 = ssub.s32 16, 16
      %843 = vsyncadd [#allocation4], %s842
      %s845 = sshll.u32 [#allocation5], 4
      %s846 = int_to_ptr.vmem [resolvable:$true] %s845
      %848 = dma.vmem_to_hbm [thread:$0]  %s846, 16, %s3, [#allocation4]
    $region25: #{tpu_custom_call.1} parent=1 // pred_fallthru
      _
    // Predicated region
    $region26: #{tpu_custom_call.1} parent=1 // pred_check
      _
    $region27: #{tpu_custom_call.1} parent=1 // pred_check_branch
      %850 = sbr.rel (0) target = $region29
    $region28: #{tpu_custom_call.1} parent=1 // pred_region
      %851 = dma.done [#allocation4], 16
    $region29: #{tpu_custom_call.1} parent=1 // pred_fallthru
      _
    %852 = vsyncpa [#allocation3], 1
    %853 = vsyncpa [#allocation4], 1

</llo_original>
